<compile_context>
chip_gen: v5e
topology: v5e:2x2
jax: 0.10.0
libtpu: 0.0.40
codegen_flags: <defaults>
</compile_context>

<pallas_src>
import functools

import jax
import jax.numpy as jnp
from jax.experimental import pallas as pl
from jax.experimental.pallas import tpu as pltpu


# ----------------------------- kernels --------------------------------------

def _numeric_kernel(x_ref, mu_ref, var_ref, *, unit_variance, min_var, max_var):
    """graph_type == 'numeric' branch.

    x_ref:   (TB, S, D) VMEM tile (TB batch rows; last block may hold garbage
             rows past the real batch -- per-row math, sliced off outside)
    mu_ref:  (TB, D) posterior mean
    var_ref: (TB, D) posterior variance (clamped)
    """
    x = x_ref[...]                                   # (TB, S, D), native dtype
    n = x.shape[1]                                   # num_subjects (static)
    n_f = float(n)
    inv_n = 1.0 / n_f

    # f32-accumulated sublane reduce over the subject axis.
    s1 = jnp.sum(x, axis=1, dtype=jnp.float32)       # (TB, D)
    mean = s1 * inv_n

    if unit_variance:
        # var == 1 everywhere:
        #   mu      = mean * n / (n + 1)
        #   var_out = clip(1 / (n + 1), min_var, max_var)   (compile-time const)
        mu = mean * (n_f / (n_f + 1.0))
        const_var = min(max(1.0 / (n_f + 1.0), min_var), max_var)
        out_var = jnp.full(mean.shape, const_var, dtype=jnp.float32)
    else:
        # Single-pass biased variance (torch.var(..., unbiased=False)):
        #   var = E[x^2] - mean^2, clamped at 0 against cancellation.
        xf = x.astype(jnp.float32)
        s2 = jnp.sum(xf * xf, axis=1)                # (TB, D)
        var = jnp.maximum(s2 * inv_n - mean * mean, 0.0)
        # prec = n/var ; 1/(prec+1) = var/(n+var) ; mu = n*mean/(n+var)
        denom_inv = 1.0 / (var + n_f)                # single reciprocal
        mu = (n_f * mean) * denom_inv
        out_var = jnp.clip(var * denom_inv, min_var, max_var)

    mu_ref[...] = mu.astype(mu_ref.dtype)
    var_ref[...] = out_var.astype(var_ref.dtype)


def _beta_kernel(x_ref, alpha_ref, beta_ref):
    """graph_type != 'numeric' branch (Beta posterior parameters).

    alpha = n * mean + 1 = sum(x, axis=1) + 1
    beta  = n - n * mean + 1 = (n + 1) - sum(x, axis=1)
    """
    x = x_ref[...]                                   # (TB, S, D)
    n_f = float(x.shape[1])

    s = jnp.sum(x, axis=1, dtype=jnp.float32)        # (TB, D)
    alpha_ref[...] = (s + 1.0).astype(alpha_ref.dtype)
    beta_ref[...] = ((n_f + 1.0) - s).astype(beta_ref.dtype)


# ----------------------------- wrapper ---------------------------------------

def _round_up(x, m):
    return ((x + m - 1) // m) * m


def _sublane_tile(dtype):
    # Sublane tile height: 8 for 4-byte, 16 for 2-byte, 32 for 1-byte dtypes.
    return max(8, 32 // jnp.dtype(dtype).itemsize)


def _choose_tb(B, S, D, in_dtype, out_dtype, *,
               target_in_bytes=8 << 20,   # ~8 MiB input slab: v6e/v7x sweet spot
               vmem_budget=24 << 20,      # honest working-set budget (incl. f32 temps)
               num_cores=2):              # keep >= 2 grid steps for v7x megacore
    in_item = jnp.dtype(in_dtype).itemsize
    out_item = jnp.dtype(out_dtype).itemsize
    sub = _sublane_tile(out_dtype)

    row_in = S * D * in_item
    # Per-batch-row VMEM: double-buffered input slab + f32 upcast / x*x
    # temporaries (worst case, e.g. bf16 inputs) + two double-buffered outputs.
    row_vmem = 2 * row_in + 2 * S * D * 4 + 2 * 2 * D * out_item

    tb = min(target_in_bytes // max(row_in, 1), vmem_budget // max(row_vmem, 1))
    tb = max(sub, (tb // sub) * sub)

    # Never swallow the whole batch in one block when >= num_cores blocks are
    # possible: the 'parallel' axis must have something to shard on v7x.
    tb_cores = max(sub, _round_up(-(-B // num_cores), sub))
    return int(min(tb, tb_cores))


def entity2common_encoder(x, *, graph_type="numeric", unit_variance=False,
                          min_var=1e-8, max_var=100.0):
    """Pallas implementation of Entity2CommonEncoder.forward.

    x: (B, S, D) float array. Returns a pair of (B, D) arrays:
       (mu, var) if graph_type == 'numeric', else (alpha, beta).
    """
    B, S, D = x.shape
    out_dtype = x.dtype
    in_itemsize = jnp.dtype(x.dtype).itemsize
    out_itemsize = jnp.dtype(out_dtype).itemsize

    tb = _choose_tb(B, S, D, x.dtype, out_dtype)
    n_blocks = -(-B // tb)                 # cdiv
    b_pad = n_blocks * tb                  # padding applies to the OUTPUTS only

    if graph_type == "numeric":
        kernel = functools.partial(
            _numeric_kernel,
            unit_variance=bool(unit_variance),
            min_var=float(min_var),
            max_var=float(max_var),
        )
    else:
        kernel = _beta_kernel

    # Outputs are allocated at the padded batch size so every output-block
    # store is a full, in-bounds, unmasked write; the (tiny) pad rows are
    # sliced off below.  The INPUT is not padded: the last block is ragged and
    # Pallas clips its DMA to the real array.
    out_shape = (
        jax.ShapeDtypeStruct((b_pad, D), out_dtype),
        jax.ShapeDtypeStruct((b_pad, D), out_dtype),
    )

    grid_spec = pltpu.PrefetchScalarGridSpec(
        num_scalar_prefetch=0,
        grid=(n_blocks,),
        in_specs=[pl.BlockSpec((tb, S, D), lambda b: (b, 0, 0))],
        out_specs=[
            pl.BlockSpec((tb, D), lambda b: (b, 0)),
            pl.BlockSpec((tb, D), lambda b: (b, 0)),
        ],
    )

    # Honest VMEM estimate: double-buffered input slab + f32 upcast / x*x
    # temporaries + two double-buffered outputs; 2x headroom, capped so it is
    # safe on v7x's 64 MiB physical VMEM (v5e/v6e have 128 MiB).
    est = (2 * tb * S * D * in_itemsize
           + 2 * tb * S * D * 4
           + 2 * 2 * tb * D * out_itemsize)
    vmem_limit = int(min(max(2 * est, 16 * 1024 * 1024), 48 * 1024 * 1024))
    # TODO(synk): tile the S axis with a carried accumulator if S*D ever grows
    # so large that a single (sublane, S, D) slab no longer fits VMEM.

    o1, o2 = pl.pallas_call(
        kernel,
        out_shape=out_shape,
        grid_spec=grid_spec,
        compiler_params=pltpu.CompilerParams(
            dimension_semantics=("parallel",),   # shards across 2 TCs on v7x
            vmem_limit_bytes=vmem_limit,
        ),
    )(x)

    if b_pad != B:
        o1 = o1[:B]
        o2 = o2[:B]
    return o1, o2


# ----------------------------- reference (pure JAX) ---------------------------

def _reference(x, *, graph_type="numeric", unit_variance=False,
               min_var=1e-8, max_var=100.0):
    _, S, _ = x.shape
    n = jnp.float32(S)
    xf = x.astype(jnp.float32)
    mean = jnp.mean(xf, axis=1)
    if graph_type == "numeric":
        if not unit_variance:
            var = jnp.mean((xf - mean[:, None, :]) ** 2, axis=1)
        else:
            var = jnp.ones_like(mean)
        prec = (1.0 / var) * n
        mu = (1.0 / (prec + 1.0)) * prec * mean
        v = jnp.clip(1.0 / (prec + 1.0), min_var, max_var)
        return mu.astype(x.dtype), v.astype(x.dtype)
    else:
        alpha = n * mean + 1.0
        beta = n - n * mean + 1.0
        return alpha.astype(x.dtype), beta.astype(x.dtype)


# ----------------------------- main -------------------------------------------

if __name__ == "__main__":
    key = jax.random.PRNGKey(0)

    # (batch, num_subjects, hidden) — small shapes, hidden lane-dense (128).
    B, S, D = 2, 8, 128
    x = jax.random.normal(key, (B, S, D), dtype=jnp.float32)

    # numeric branch
    mu, var = entity2common_encoder(x, graph_type="numeric",
                                    unit_variance=False,
                                    min_var=1e-8, max_var=100.0)
    jax.block_until_ready((mu, var))
    mu_ref, var_ref = _reference(x, graph_type="numeric")
    assert mu.shape == (B, D) and var.shape == (B, D)
    assert jnp.allclose(mu, mu_ref, rtol=1e-5, atol=1e-5)
    assert jnp.allclose(var, var_ref, rtol=1e-5, atol=1e-5)

    # numeric branch with unit_variance=True (constant-folded path)
    mu_u, var_u = entity2common_encoder(x, graph_type="numeric",
                                        unit_variance=True,
                                        min_var=1e-8, max_var=100.0)
    jax.block_until_ready((mu_u, var_u))
    mu_u_ref, var_u_ref = _reference(x, graph_type="numeric", unit_variance=True)
    assert jnp.allclose(mu_u, mu_u_ref, rtol=1e-5, atol=1e-5)
    assert jnp.allclose(var_u, var_u_ref, rtol=1e-5, atol=1e-5)

    # non-numeric (Beta) branch — probabilities in [0, 1]
    key2 = jax.random.PRNGKey(1)
    xp = jax.random.uniform(key2, (B, S, D), dtype=jnp.float32)
    alpha, beta = entity2common_encoder(xp, graph_type="binary")
    jax.block_until_ready((alpha, beta))
    a_ref, b_ref = _reference(xp, graph_type="binary")
    assert jnp.allclose(alpha, a_ref, rtol=1e-5, atol=1e-5)
    assert jnp.allclose(beta, b_ref, rtol=1e-5, atol=1e-5)

    print("KERNEL_OK")
</pallas_src>

<mosaic_0001>
module attributes {stable_mosaic.version = 11 : i64} {
  func.func @_numeric_kernel(%arg0: i32, %arg1: memref<8x8x128xf32, #tpu.memory_space<vmem>>, %arg2: memref<8x128xf32, #tpu.memory_space<vmem>>, %arg3: memref<8x128xf32, #tpu.memory_space<vmem>>) attributes {dimension_semantics = [#tpu.dimension_semantics<parallel>], iteration_bounds = array<i64: 1>, scalar_prefetch = 0 : i64, scratch_operands = 0 : i64, tpu.core_type = #tpu.core_type<tc>, window_params = [{transform_indices = @transform_0, window_bounds = array<i64: 8, 8, 128>}, {transform_indices = @transform_1, window_bounds = array<i64: 8, 128>}, {transform_indices = @transform_2, window_bounds = array<i64: 8, 128>}]} {
    %c0 = arith.constant 0 : index
    %c0_0 = arith.constant 0 : index
    %c0_1 = arith.constant 0 : index
    %0 = vector.load %arg1[%c0, %c0_0, %c0_1] : memref<8x8x128xf32, #tpu.memory_space<vmem>>, vector<8x8x128xf32>
    %cst = arith.constant dense<0.000000e+00> : vector<8x128xf32>
    %1 = vector.multi_reduction <add>, %0, %cst [1] : vector<8x8x128xf32> to vector<8x128xf32>
    %cst_2 = arith.constant 1.250000e-01 : f32
    %2 = vector.broadcast %cst_2 : f32 to vector<8x128xf32>
    %3 = arith.mulf %1, %2 : vector<8x128xf32>
    %4 = arith.mulf %0, %0 : vector<8x8x128xf32>
    %cst_3 = arith.constant dense<0.000000e+00> : vector<8x128xf32>
    %5 = vector.multi_reduction <add>, %4, %cst_3 [1] : vector<8x8x128xf32> to vector<8x128xf32>
    %cst_4 = arith.constant 1.250000e-01 : f32
    %6 = vector.broadcast %cst_4 : f32 to vector<8x128xf32>
    %7 = arith.mulf %5, %6 : vector<8x128xf32>
    %8 = arith.mulf %3, %3 : vector<8x128xf32>
    %9 = arith.subf %7, %8 : vector<8x128xf32>
    %cst_5 = arith.constant 0.000000e+00 : f32
    %10 = vector.broadcast %cst_5 : f32 to vector<8x128xf32>
    %11 = arith.maximumf %9, %10 : vector<8x128xf32>
    %cst_6 = arith.constant 8.000000e+00 : f32
    %12 = vector.broadcast %cst_6 : f32 to vector<8x128xf32>
    %13 = arith.addf %11, %12 : vector<8x128xf32>
    %cst_7 = arith.constant 1.000000e+00 : f32
    %14 = vector.broadcast %cst_7 : f32 to vector<8x128xf32>
    %15 = arith.divf %14, %13 : vector<8x128xf32>
    %cst_8 = arith.constant 8.000000e+00 : f32
    %16 = vector.broadcast %cst_8 : f32 to vector<8x128xf32>
    %17 = arith.mulf %16, %3 : vector<8x128xf32>
    %18 = arith.mulf %17, %15 : vector<8x128xf32>
    %19 = arith.mulf %11, %15 : vector<8x128xf32>
    %cst_9 = arith.constant 9.99999993E-9 : f32
    %cst_10 = arith.constant 1.000000e+02 : f32
    %20 = vector.broadcast %cst_9 : f32 to vector<8x128xf32>
    %21 = arith.maximumf %20, %19 : vector<8x128xf32>
    %22 = vector.broadcast %cst_10 : f32 to vector<8x128xf32>
    %23 = arith.minimumf %22, %21 : vector<8x128xf32>
    %c0_11 = arith.constant 0 : index
    %c0_12 = arith.constant 0 : index
    %24 = vector.load %arg2[%c0_11, %c0_12] : memref<8x128xf32, #tpu.memory_space<vmem>>, vector<8x128xf32>
    tpu.vector_store %arg2[%c0_11, %c0_12], %18 {strides = array<i32>} : memref<8x128xf32, #tpu.memory_space<vmem>>, vector<8x128xf32>,
    %c0_13 = arith.constant 0 : index
    %c0_14 = arith.constant 0 : index
    %25 = vector.load %arg3[%c0_13, %c0_14] : memref<8x128xf32, #tpu.memory_space<vmem>>, vector<8x128xf32>
    tpu.vector_store %arg3[%c0_13, %c0_14], %23 {strides = array<i32>} : memref<8x128xf32, #tpu.memory_space<vmem>>, vector<8x128xf32>,
    return
  }
  func.func @transform_0(%arg0: i32) -> (i32, i32, i32) {
    %c0_i32 = arith.constant 0 : i32
    %c0_i32_0 = arith.constant 0 : i32
    %c0_i32_1 = arith.constant 0 : i32
    return %arg0, %c0_i32, %c0_i32_0 : i32, i32, i32
  }
  func.func @transform_1(%arg0: i32) -> (i32, i32) {
    %c0_i32 = arith.constant 0 : i32
    %c0_i32_0 = arith.constant 0 : i32
    return %arg0, %c0_i32 : i32, i32
  }
  func.func @transform_2(%arg0: i32) -> (i32, i32) {
    %c0_i32 = arith.constant 0 : i32
    %c0_i32_0 = arith.constant 0 : i32
    return %arg0, %c0_i32 : i32, i32
  }
}

</mosaic_0001>

<llo_original>
// kernel: tpu_custom_call.1
$region0: #{tpu_custom_call.1}
  #allocation0 [shape = 'u32[]', space=smem, size = 0x4, offset = 0x4, fixed_abs, tag = 'smem constant byte address 0x4 - core index']
  #allocation1 [shape = 'u32[72,128]{1,0:T(1,128)}', space=vmem, size = 0x9000, scoped, tag = 'internal scratch']
  %s0 = inlined_call_operand.hbm [shape: f32[2,8,128], index: 0, kind: input, shape index: {}]
  %s1 = inlined_call_operand.hbm [shape: f32[8,128], index: 1, kind: output, shape index: {0}]
  %s2 = inlined_call_operand.hbm [shape: f32[8,128], index: 2, kind: output, shape index: {1}]
  %3 = xla_tuple %s1, %s2
  %s4 = sld [smem:[#allocation0]]
  $region26: #{tpu_custom_call.1} parent=0
    _
  %s6 = ssub.s32 1, %s4
  %s7 = scalar_select 0, %s6, %s4
  $region1: #{tpu_custom_call.1} parent=0
    #allocation2 [shape = 'u8[32768]{0}', space=vmem, size = 0x8000, scoped, tag = 'input window, operand 0, single buffered']
    #allocation3 [shape = 's32[1]{0}', space=sflag, size = 0x4, scoped, tag = 'scoped memory for tpu_custom_call.1']
    #allocation4 [shape = 's32[1]{0}', space=sflag, size = 0x4, scoped, tag = 'scoped memory for tpu_custom_call.1']
    #allocation5 [shape = 'u8[4096]{0}', space=vmem, size = 0x1000, scoped, tag = 'output window, operand 0, single buffered']
    #allocation6 [shape = 'u8[4096]{0}', space=vmem, size = 0x1000, scoped, tag = 'output window, operand 1, single buffered']
    #allocation7 [shape = 's32[1]{0}', space=sflag, size = 0x4, scoped, tag = 'scoped memory for tpu_custom_call.1']
    %8 = vsyncpa [#allocation3], 0
    %9 = vsyncpa [#allocation4], 0
    %10 = vsyncpa [#allocation7], 0
    // Predicated region
    $region2: #{tpu_custom_call.1} parent=1 // pred_check
      _
    $region3: #{tpu_custom_call.1} parent=1 // pred_check_branch
      %12 = sbr.rel (0) target = $region5
    $region4: #{tpu_custom_call.1} parent=1 // pred_region
      %14 = vsyncadd [#allocation3], 768
      %s15 = sshll.u32 %s0, 4
      %s16 = int_to_ptr.hbm [resolvable:$true] %s15
      %s17 = sshll.u32 [#allocation2], 4
      %s18 = int_to_ptr.vmem [resolvable:$true] %s17
      %23 = dma.hbm_to_vmem [thread:$0]  %s16, 256, %s18, [#allocation3], 128, 128, 8
    $region5: #{tpu_custom_call.1} parent=1 // pred_fallthru
      _
    // Predicated region
    $region6: #{tpu_custom_call.1} parent=1 // pred_check
      _
    $region7: #{tpu_custom_call.1} parent=1 // pred_check_branch
      %25 = sbr.rel (0) target = $region9
    $region8: #{tpu_custom_call.1} parent=1 // pred_region
      %27 = dma.done [#allocation3], 1024
    $region9: #{tpu_custom_call.1} parent=1 // pred_fallthru
      _
    %v28 = vld [vmem:[#allocation2] sm:$0xff]
    %v29 = vld [vmem:[#allocation2 + $0x8] sm:$0xff]
    %v30 = vld [vmem:[#allocation2 + $0x10] sm:$0xff]
    %v31 = vld [vmem:[#allocation2 + $0x18] sm:$0xff]
    %v32 = vld [vmem:[#allocation2 + $0x20] sm:$0xff]
    %v33 = vld [vmem:[#allocation2 + $0x28] sm:$0xff]
    %v34 = vld [vmem:[#allocation2 + $0x30] sm:$0xff]
    %v35 = vld [vmem:[#allocation2 + $0x38] sm:$0xff]
    %v36 = vrot.slane %v28, 4
    %v37 = vadd.f32 %v28, %v36
    %v38 = vrot.slane %v37, 2
    %v39 = vadd.f32 %v37, %v38
    %v40 = vrot.slane %v39, 1
    %v41 = vadd.f32 %v39, %v40
    %v42 = vrot.slane %v29, 4
    %v43 = vadd.f32 %v29, %v42
    %v44 = vrot.slane %v43, 2
    %v45 = vadd.f32 %v43, %v44
    %v46 = vrot.slane %v45, 1
    %v47 = vadd.f32 %v45, %v46
    %v48 = vrot.slane %v30, 4
    %v49 = vadd.f32 %v30, %v48
    %v50 = vrot.slane %v49, 2
    %v51 = vadd.f32 %v49, %v50
    %v52 = vrot.slane %v51, 1
    %v53 = vadd.f32 %v51, %v52
    %v54 = vrot.slane %v31, 4
    %v55 = vadd.f32 %v31, %v54
    %v56 = vrot.slane %v55, 2
    %v57 = vadd.f32 %v55, %v56
    %v58 = vrot.slane %v57, 1
    %v59 = vadd.f32 %v57, %v58
    %v60 = vrot.slane %v32, 4
    %v61 = vadd.f32 %v32, %v60
    %v62 = vrot.slane %v61, 2
    %v63 = vadd.f32 %v61, %v62
    %v64 = vrot.slane %v63, 1
    %v65 = vadd.f32 %v63, %v64
    %v66 = vrot.slane %v33, 4
    %v67 = vadd.f32 %v33, %v66
    %v68 = vrot.slane %v67, 2
    %v69 = vadd.f32 %v67, %v68
    %v70 = vrot.slane %v69, 1
    %v71 = vadd.f32 %v69, %v70
    %v72 = vrot.slane %v34, 4
    %v73 = vadd.f32 %v34, %v72
    %v74 = vrot.slane %v73, 2
    %v75 = vadd.f32 %v73, %v74
    %v76 = vrot.slane %v75, 1
    %v77 = vadd.f32 %v75, %v76
    %v78 = vrot.slane %v35, 4
    %v79 = vadd.f32 %v35, %v78
    %v80 = vrot.slane %v79, 2
    %v81 = vadd.f32 %v79, %v80
    %v82 = vrot.slane %v81, 1
    %v83 = vadd.f32 %v81, %v82
    %v84 = vmul.f32 %v41, 0.125
    %v85 = vmul.f32 %v47, 0.125
    %v86 = vmul.f32 %v53, 0.125
    %v87 = vmul.f32 %v59, 0.125
    %v88 = vmul.f32 %v65, 0.125
    %v89 = vmul.f32 %v71, 0.125
    %v90 = vmul.f32 %v77, 0.125
    %v91 = vmul.f32 %v83, 0.125
    %v92 = vmul.f32 %v28, %v28
    %v93 = vmul.f32 %v29, %v29
    %v94 = vmul.f32 %v30, %v30
    %v95 = vmul.f32 %v31, %v31
    %v96 = vmul.f32 %v32, %v32
    %v97 = vmul.f32 %v33, %v33
    %v98 = vmul.f32 %v34, %v34
    %v99 = vmul.f32 %v35, %v35
    %v100 = vrot.slane %v92, 4
    %v101 = vadd.f32 %v92, %v100
    %v102 = vrot.slane %v101, 2
    %v103 = vadd.f32 %v101, %v102
    %v104 = vrot.slane %v103, 1
    %v105 = vadd.f32 %v103, %v104
    %v106 = vrot.slane %v93, 4
    %v107 = vadd.f32 %v93, %v106
    %v108 = vrot.slane %v107, 2
    %v109 = vadd.f32 %v107, %v108
    %v110 = vrot.slane %v109, 1
    %v111 = vadd.f32 %v109, %v110
    %v112 = vrot.slane %v94, 4
    %v113 = vadd.f32 %v94, %v112
    %v114 = vrot.slane %v113, 2
    %v115 = vadd.f32 %v113, %v114
    %v116 = vrot.slane %v115, 1
    %v117 = vadd.f32 %v115, %v116
    %v118 = vrot.slane %v95, 4
    %v119 = vadd.f32 %v95, %v118
    %v120 = vrot.slane %v119, 2
    %v121 = vadd.f32 %v119, %v120
    %v122 = vrot.slane %v121, 1
    %v123 = vadd.f32 %v121, %v122
    %v124 = vrot.slane %v96, 4
    %v125 = vadd.f32 %v96, %v124
    %v126 = vrot.slane %v125, 2
    %v127 = vadd.f32 %v125, %v126
    %v128 = vrot.slane %v127, 1
    %v129 = vadd.f32 %v127, %v128
    %v130 = vrot.slane %v97, 4
    %v131 = vadd.f32 %v97, %v130
    %v132 = vrot.slane %v131, 2
    %v133 = vadd.f32 %v131, %v132
    %v134 = vrot.slane %v133, 1
    %v135 = vadd.f32 %v133, %v134
    %v136 = vrot.slane %v98, 4
    %v137 = vadd.f32 %v98, %v136
    %v138 = vrot.slane %v137, 2
    %v139 = vadd.f32 %v137, %v138
    %v140 = vrot.slane %v139, 1
    %v141 = vadd.f32 %v139, %v140
    %v142 = vrot.slane %v99, 4
    %v143 = vadd.f32 %v99, %v142
    %v144 = vrot.slane %v143, 2
    %v145 = vadd.f32 %v143, %v144
    %v146 = vrot.slane %v145, 1
    %v147 = vadd.f32 %v145, %v146
    %v148 = vmul.f32 %v105, 0.125
    %v149 = vmul.f32 %v111, 0.125
    %v150 = vmul.f32 %v117, 0.125
    %v151 = vmul.f32 %v123, 0.125
    %v152 = vmul.f32 %v129, 0.125
    %v153 = vmul.f32 %v135, 0.125
    %v154 = vmul.f32 %v141, 0.125
    %v155 = vmul.f32 %v147, 0.125
    %v156 = vmul.f32 %v84, %v84
    %v157 = vmul.f32 %v85, %v85
    %v158 = vmul.f32 %v86, %v86
    %v159 = vmul.f32 %v87, %v87
    %v160 = vmul.f32 %v88, %v88
    %v161 = vmul.f32 %v89, %v89
    %v162 = vmul.f32 %v90, %v90
    %v163 = vmul.f32 %v91, %v91
    %v164 = vsub.f32 %v148, %v156
    %v165 = vsub.f32 %v149, %v157
    %v166 = vsub.f32 %v150, %v158
    %v167 = vsub.f32 %v151, %v159
    %v168 = vsub.f32 %v152, %v160
    %v169 = vsub.f32 %v153, %v161
    %v170 = vsub.f32 %v154, %v162
    %v171 = vsub.f32 %v155, %v163
    %v172 = vmax.f32 %v164, 0.0
    %v173 = vmax.f32 %v165, 0.0
    %v174 = vmax.f32 %v166, 0.0
    %v175 = vmax.f32 %v167, 0.0
    %v176 = vmax.f32 %v168, 0.0
    %v177 = vmax.f32 %v169, 0.0
    %v178 = vmax.f32 %v170, 0.0
    %v179 = vmax.f32 %v171, 0.0
    %v180 = vadd.f32 %v172, 8.0
    %v181 = vadd.f32 %v173, 8.0
    %v182 = vadd.f32 %v174, 8.0
    %v183 = vadd.f32 %v175, 8.0
    %v184 = vadd.f32 %v176, 8.0
    %v185 = vadd.f32 %v177, 8.0
    %v186 = vadd.f32 %v178, 8.0
    %v187 = vadd.f32 %v179, 8.0
    %v188 = vrcp.pop %v180
    %v189 = vmul.f32 %v180, %v188
    %v190 = vsub.f32 1.0, %v189
    %v191 = vmul.f32 %v188, %v190
    %v192 = vadd.f32 %v188, %v191
    %vm193 = vweird.f32 %v180
    %vm194 = vweird.f32 %v188
    %vm195 = vmor %vm193, %vm194
    %v196 = vsel %vm195, %v188, %v192
    %v197 = vand.u32 2147483647, %v180
    %vm198 = vcmp.eq.f32.partialorder %v197, 8.507059e+37
    %v199 = vand.u32 %v180, 2147483648
    %v200 = vor.u32 1.1754944e-38, %v199
    %v201 = vsel %vm198, %v200, %v196
    %v202 = vmul.f32 1.0, %v201
    %v203 = vrcp.pop %v181
    %v204 = vmul.f32 %v181, %v203
    %v205 = vsub.f32 1.0, %v204
    %v206 = vmul.f32 %v203, %v205
    %v207 = vadd.f32 %v203, %v206
    %vm208 = vweird.f32 %v181
    %vm209 = vweird.f32 %v203
    %vm210 = vmor %vm208, %vm209
    %v211 = vsel %vm210, %v203, %v207
    %v212 = vand.u32 2147483647, %v181
    %vm213 = vcmp.eq.f32.partialorder %v212, 8.507059e+37
    %v214 = vand.u32 %v181, 2147483648
    %v215 = vor.u32 1.1754944e-38, %v214
    %v216 = vsel %vm213, %v215, %v211
    %v217 = vmul.f32 1.0, %v216
    %v218 = vrcp.pop %v182
    %v219 = vmul.f32 %v182, %v218
    %v220 = vsub.f32 1.0, %v219
    %v221 = vmul.f32 %v218, %v220
    %v222 = vadd.f32 %v218, %v221
    %vm223 = vweird.f32 %v182
    %vm224 = vweird.f32 %v218
    %vm225 = vmor %vm223, %vm224
    %v226 = vsel %vm225, %v218, %v222
    %v227 = vand.u32 2147483647, %v182
    %vm228 = vcmp.eq.f32.partialorder %v227, 8.507059e+37
    %v229 = vand.u32 %v182, 2147483648
    %v230 = vor.u32 1.1754944e-38, %v229
    %v231 = vsel %vm228, %v230, %v226
    %v232 = vmul.f32 1.0, %v231
    %v233 = vrcp.pop %v183
    %v234 = vmul.f32 %v183, %v233
    %v235 = vsub.f32 1.0, %v234
    %v236 = vmul.f32 %v233, %v235
    %v237 = vadd.f32 %v233, %v236
    %vm238 = vweird.f32 %v183
    %vm239 = vweird.f32 %v233
    %vm240 = vmor %vm238, %vm239
    %v241 = vsel %vm240, %v233, %v237
    %v242 = vand.u32 2147483647, %v183
    %vm243 = vcmp.eq.f32.partialorder %v242, 8.507059e+37
    %v244 = vand.u32 %v183, 2147483648
    %v245 = vor.u32 1.1754944e-38, %v244
    %v246 = vsel %vm243, %v245, %v241
    %v247 = vmul.f32 1.0, %v246
    %v248 = vrcp.pop %v184
    %v249 = vmul.f32 %v184, %v248
    %v250 = vsub.f32 1.0, %v249
    %v251 = vmul.f32 %v248, %v250
    %v252 = vadd.f32 %v248, %v251
    %vm253 = vweird.f32 %v184
    %vm254 = vweird.f32 %v248
    %vm255 = vmor %vm253, %vm254
    %v256 = vsel %vm255, %v248, %v252
    %v257 = vand.u32 2147483647, %v184
    %vm258 = vcmp.eq.f32.partialorder %v257, 8.507059e+37
    %v259 = vand.u32 %v184, 2147483648
    %v260 = vor.u32 1.1754944e-38, %v259
    %v261 = vsel %vm258, %v260, %v256
    %v262 = vmul.f32 1.0, %v261
    %v263 = vrcp.pop %v185
    %v264 = vmul.f32 %v185, %v263
    %v265 = vsub.f32 1.0, %v264
    %v266 = vmul.f32 %v263, %v265
    %v267 = vadd.f32 %v263, %v266
    %vm268 = vweird.f32 %v185
    %vm269 = vweird.f32 %v263
    %vm270 = vmor %vm268, %vm269
    %v271 = vsel %vm270, %v263, %v267
    %v272 = vand.u32 2147483647, %v185
    %vm273 = vcmp.eq.f32.partialorder %v272, 8.507059e+37
    %v274 = vand.u32 %v185, 2147483648
    %v275 = vor.u32 1.1754944e-38, %v274
    %v276 = vsel %vm273, %v275, %v271
    %v277 = vmul.f32 1.0, %v276
    %v278 = vrcp.pop %v186
    %v279 = vmul.f32 %v186, %v278
    %v280 = vsub.f32 1.0, %v279
    %v281 = vmul.f32 %v278, %v280
    %v282 = vadd.f32 %v278, %v281
    %vm283 = vweird.f32 %v186
    %vm284 = vweird.f32 %v278
    %vm285 = vmor %vm283, %vm284
    %v286 = vsel %vm285, %v278, %v282
    %v287 = vand.u32 2147483647, %v186
    %vm288 = vcmp.eq.f32.partialorder %v287, 8.507059e+37
    %v289 = vand.u32 %v186, 2147483648
    %v290 = vor.u32 1.1754944e-38, %v289
    %v291 = vsel %vm288, %v290, %v286
    %v292 = vmul.f32 1.0, %v291
    %v293 = vrcp.pop %v187
    %v294 = vmul.f32 %v187, %v293
    %v295 = vsub.f32 1.0, %v294
    %v296 = vmul.f32 %v293, %v295
    %v297 = vadd.f32 %v293, %v296
    %vm298 = vweird.f32 %v187
    %vm299 = vweird.f32 %v293
    %vm300 = vmor %vm298, %vm299
    %v301 = vsel %vm300, %v293, %v297
    %v302 = vand.u32 2147483647, %v187
    %vm303 = vcmp.eq.f32.partialorder %v302, 8.507059e+37
    %v304 = vand.u32 %v187, 2147483648
    %v305 = vor.u32 1.1754944e-38, %v304
    %v306 = vsel %vm303, %v305, %v301
    %v307 = vmul.f32 1.0, %v306
    %v308 = vmul.f32 %v84, 8.0
    %v309 = vmul.f32 %v85, 8.0
    %v310 = vmul.f32 %v86, 8.0
    %v311 = vmul.f32 %v87, 8.0
    %v312 = vmul.f32 %v88, 8.0
    %v313 = vmul.f32 %v89, 8.0
    %v314 = vmul.f32 %v90, 8.0
    %v315 = vmul.f32 %v91, 8.0
    %v316 = vmul.f32 %v308, %v202
    %v317 = vmul.f32 %v309, %v217
    %v318 = vmul.f32 %v310, %v232
    %v319 = vmul.f32 %v311, %v247
    %v320 = vmul.f32 %v312, %v262
    %v321 = vmul.f32 %v313, %v277
    %v322 = vmul.f32 %v314, %v292
    %v323 = vmul.f32 %v315, %v307
    %v324 = vmul.f32 %v172, %v202
    %v325 = vmul.f32 %v173, %v217
    %v326 = vmul.f32 %v174, %v232
    %v327 = vmul.f32 %v175, %v247
    %v328 = vmul.f32 %v176, %v262
    %v329 = vmul.f32 %v177, %v277
    %v330 = vmul.f32 %v178, %v292
    %v331 = vmul.f32 %v179, %v307
    %v332 = vmax.f32 %v324, 1e-08
    %v333 = vmax.f32 %v325, 1e-08
    %v334 = vmax.f32 %v326, 1e-08
    %v335 = vmax.f32 %v327, 1e-08
    %v336 = vmax.f32 %v328, 1e-08
    %v337 = vmax.f32 %v329, 1e-08
    %v338 = vmax.f32 %v330, 1e-08
    %v339 = vmax.f32 %v331, 1e-08
    %v340 = vmin.f32 %v332, 100.0
    %v341 = vmin.f32 %v333, 100.0
    %v342 = vmin.f32 %v334, 100.0
    %v343 = vmin.f32 %v335, 100.0
    %v344 = vmin.f32 %v336, 100.0
    %v345 = vmin.f32 %v337, 100.0
    %v346 = vmin.f32 %v338, 100.0
    %v347 = vmin.f32 %v339, 100.0
    %vm356 = vcmask 1041409
    %v357 = vsel %vm356, %v317, %v316
    %vm358 = vcmask 1042434
    %v359 = vsel %vm358, %v318, %v357
    %vm360 = vcmask 1043459
    %v361 = vsel %vm360, %v319, %v359
    %vm362 = vcmask 1044484
    %v363 = vsel %vm362, %v320, %v361
    %vm364 = vcmask 1045509
    %v365 = vsel %vm364, %v321, %v363
    %vm366 = vcmask 1046534
    %v367 = vsel %vm366, %v322, %v365
    %vm368 = vcmask 1047559
    %v369 = vsel %vm368, %v323, %v367
    %371 = vst [vmem:[#allocation5] sm:$0xff] %v369
    %v380 = vsel %vm356, %v341, %v340
    %v381 = vsel %vm358, %v342, %v380
    %v382 = vsel %vm360, %v343, %v381
    %v383 = vsel %vm362, %v344, %v382
    %v384 = vsel %vm364, %v345, %v383
    %v385 = vsel %vm366, %v346, %v384
    %v386 = vsel %vm368, %v347, %v385
    %388 = vst [vmem:[#allocation6] sm:$0xff] %v386
    // Predicated region
    $region10: #{tpu_custom_call.1} parent=1 // pred_check
      _
    $region11: #{tpu_custom_call.1} parent=1 // pred_check_branch
      %390 = sbr.rel (0) target = $region13
    $region12: #{tpu_custom_call.1} parent=1 // pred_region
      %392 = vsyncadd [#allocation4], 0
      %s394 = sshll.u32 [#allocation5], 4
      %s395 = int_to_ptr.vmem [resolvable:$true] %s394
      %s396 = sshll.u32 %s1, 4
      %s397 = int_to_ptr.hbm [resolvable:$true] %s396
      %399 = dma.vmem_to_hbm [thread:$0]  %s395, 128, %s397, [#allocation4]
    $region13: #{tpu_custom_call.1} parent=1 // pred_fallthru
      _
    // Predicated region
    $region14: #{tpu_custom_call.1} parent=1 // pred_check
      _
    $region15: #{tpu_custom_call.1} parent=1 // pred_check_branch
      %401 = sbr.rel (0) target = $region17
    $region16: #{tpu_custom_call.1} parent=1 // pred_region
      %403 = vsyncadd [#allocation7], 0
      %s405 = sshll.u32 [#allocation6], 4
      %s406 = int_to_ptr.vmem [resolvable:$true] %s405
      %s407 = sshll.u32 %s2, 4
      %s408 = int_to_ptr.hbm [resolvable:$true] %s407
      %410 = dma.vmem_to_hbm [thread:$0]  %s406, 128, %s408, [#allocation7]
    $region17: #{tpu_custom_call.1} parent=1 // pred_fallthru
      _
    // Predicated region
    $region18: #{tpu_custom_call.1} parent=1 // pred_check
      _
    $region19: #{tpu_custom_call.1} parent=1 // pred_check_branch
      %412 = sbr.rel (0) target = $region21
    $region20: #{tpu_custom_call.1} parent=1 // pred_region
      %414 = dma.done [#allocation4], 128
    $region21: #{tpu_custom_call.1} parent=1 // pred_fallthru
      _
    // Predicated region
    $region22: #{tpu_custom_call.1} parent=1 // pred_check
      _
    $region23: #{tpu_custom_call.1} parent=1 // pred_check_branch
      %416 = sbr.rel (0) target = $region25
    $region24: #{tpu_custom_call.1} parent=1 // pred_region
      %418 = dma.done [#allocation7], 128
    $region25: #{tpu_custom_call.1} parent=1 // pred_fallthru
      _
    %419 = vsyncpa [#allocation3], 1
    %420 = vsyncpa [#allocation4], 1
    %421 = vsyncpa [#allocation7], 1

</llo_original>
